<compile_context>
chip_gen: v6e
topology: v6e:2x2x1
jax: 0.10.0
libtpu: 0.0.40
codegen_flags: <defaults>
</compile_context>

<pallas_src>
import functools

import jax
import jax.numpy as jnp
from jax.experimental import pallas as pl
from jax.experimental.pallas import tpu as pltpu

MB = 1024 * 1024


def _round_up(a, b):
    return ((a + b - 1) // b) * b


def _device_vmem_bytes():
    """Per-core VMEM capacity; conservative fallback if the query is unavailable."""
    try:
        info = pltpu.get_tpu_info()
        v = getattr(info, "vmem_capacity_bytes", None)
        if v:
            return int(v)
    except Exception:
        pass
    return 64 * MB  # v7x per-TensorCore size (most restrictive)


# ---------------------------------------------------------------------------
# Tiling plan (pure Python, shape/dtype/device-dependent only)
# ---------------------------------------------------------------------------
def plan_mlp_tiles(tokens, H, I, dtype):
    """Pick (tm, ti, I_pad) from the chip's VMEM capacity.

    tm (token tile) drives arithmetic intensity on the weight stream (weights
    are re-read from HBM once per token tile), so it is kept as large as the
    VMEM budget allows; ti (intermediate tile) is shrunk first when VMEM is
    tight (v7x: 64 MiB/TC).
    """
    itemsize = jnp.dtype(dtype).itemsize
    I_pad = _round_up(I, 128)

    vmem_cap = _device_vmem_bytes()
    big_vmem = vmem_cap >= 100 * MB          # v5e / v6e (128 MiB); v7x is 64 MiB
    budget = max(24 * MB, vmem_cap - 12 * MB)  # headroom for Mosaic internals

    # ---- token tile --------------------------------------------------------
    t_pad8 = _round_up(max(tokens, 8), 8)
    tm_target = 1024 if big_vmem else 512    # compute-bound thresholds per gen
    if t_pad8 <= tm_target:
        tm = t_pad8
        # 64-MiB parts (v7x) have 2 TensorCores: split mid-size token counts
        # so grid_i >= 2 and both cores get work.
        if (not big_vmem) and t_pad8 >= 512:
            tm = _round_up((t_pad8 + 1) // 2, 8)
    else:
        tm = tm_target

    # ---- intermediate tile candidates (multiples of 128 dividing I_pad) -----
    if I_pad <= 512:
        ti_cands = [I_pad]
    else:
        ti_cands = [c for c in (512, 384, 256, 128) if I_pad % c == 0]
        if not ti_cands:
            ti_cands = [128]  # unreachable: 128 | I_pad by construction

    def vmem_est(tm_, ti_):
        x_blk = tm_ * H * itemsize
        o_blk = tm_ * H * itemsize
        w_blk = (2 * H * ti_ + ti_ * H) * itemsize
        acc = tm_ * H * 4
        return 2 * (x_blk + o_blk + w_blk) + acc   # 2x = double-buffered pipeline

    ti = None
    for c in ti_cands:
        if vmem_est(tm, c) <= budget:
            ti = c
            break
    if ti is None:
        ti = ti_cands[-1]
        while tm > 256 and vmem_est(tm, ti) > budget:
            tm = max(256, tm - 256)

    return tm, ti, I_pad


# ---------------------------------------------------------------------------
# Weight packing (do ONCE at weight-load time, not per forward call)
# ---------------------------------------------------------------------------
def prepare_mlp_weights(w_gate, w_up, w_down, ti):
    """Pad the intermediate dim to a multiple of 128 and tile-interleave gate/up
    into one [H, 2*I_pad] matrix: column block j (width 2*ti) = [gate_j | up_j],
    so a single BlockSpec / single MXU pass covers both projections."""
    H, I = w_gate.shape
    I_pad = _round_up(I, 128)
    assert I_pad % ti == 0, (I_pad, ti)
    if I_pad != I:
        pad = I_pad - I
        w_gate = jnp.pad(w_gate, ((0, 0), (0, pad)))
        w_up = jnp.pad(w_up, ((0, 0), (0, pad)))
        w_down = jnp.pad(w_down, ((0, pad), (0, 0)))
    n_j = I_pad // ti
    g = w_gate.reshape(H, n_j, ti)
    u = w_up.reshape(H, n_j, ti)
    w_gate_up = jnp.concatenate([g, u], axis=2).reshape(H, 2 * I_pad)
    return w_gate_up, w_down


# ---------------------------------------------------------------------------
# Kernel
# ---------------------------------------------------------------------------
def _mlp_kernel(x_ref, wgu_ref, wd_ref, o_ref, acc_ref, *, n_j, ti):
    """One (token tile i, intermediate tile j) grid step.

    x_ref  : [tm, H]      VMEM  token tile (revisited across j)
    wgu_ref: [H, 2*ti]    VMEM  interleaved [gate_j | up_j] weight slab
    wd_ref : [ti, H]      VMEM  down_proj weight slab
    o_ref  : [tm, H]      VMEM  output tile (written only at j == n_j-1)
    acc_ref: [tm, H] f32  VMEM  accumulator scratch (unused when n_j == 1)
    """
    j = pl.program_id(1)
    x = x_ref[...]

    # fused gate/up projection: one MXU pass, N = 2*ti
    gu = jnp.dot(x, wgu_ref[...], preferred_element_type=jnp.float32)
    gate = gu[:, :ti]
    up = gu[:, ti:]

    # SiLU in f32 (sigmoid -> EUP slot, hidden under the matmuls)
    hidden = (gate * jax.nn.sigmoid(gate)) * up

    # partial down projection for this I-slab (f32 accumulation on the MXU)
    partial = jnp.dot(hidden.astype(x.dtype), wd_ref[...],
                      preferred_element_type=jnp.float32)

    if n_j == 1:
        o_ref[...] = partial.astype(o_ref.dtype)
    else:
        @pl.when(j == 0)
        def _():
            acc_ref[...] = partial                       # no separate zero-init

        @pl.when(jnp.logical_and(j > 0, j < n_j - 1))
        def _():
            acc_ref[...] += partial

        @pl.when(j == n_j - 1)
        def _():
            # fuse the last partial with the output write (saves an f32
            # accumulator store + reload per token tile)
            o_ref[...] = (acc_ref[...] + partial).astype(o_ref.dtype)


# ---------------------------------------------------------------------------
# Forward wrapper
# ---------------------------------------------------------------------------
@functools.partial(jax.jit, static_argnames=("tm", "ti"))
def mlp_forward(x, w_gate_up, w_down, *, tm, ti):
    """x: [B, S, H] -> [B, S, H].  w_gate_up: [H, 2*I_pad] (tile-interleaved),
    w_down: [I_pad, H].  tm/ti must match plan_mlp_tiles / prepare_mlp_weights."""
    B, S, H = x.shape
    I_pad = w_gate_up.shape[1] // 2
    assert w_down.shape == (I_pad, H)
    assert I_pad % ti == 0 and tm % 8 == 0
    itemsize = jnp.dtype(x.dtype).itemsize

    tokens = B * S
    tokens_padded = _round_up(tokens, tm)

    x2d = x.reshape(tokens, H)
    if tokens_padded != tokens:
        x2d = jnp.pad(x2d, ((0, tokens_padded - tokens), (0, 0)))

    n_i = tokens_padded // tm
    n_j = I_pad // ti
    grid = (n_i, n_j)

    # advisory cost: weights are re-streamed from HBM once per token tile
    flops = 6 * tokens_padded * H * I_pad
    bytes_accessed = (tokens_padded * H * itemsize * 2
                      + n_i * 3 * H * I_pad * itemsize)
    cost = pl.CostEstimate(flops=flops,
                           transcendentals=tokens_padded * I_pad,
                           bytes_accessed=bytes_accessed)

    # VMEM limit derived from the actual chip capacity (v7x: 64 MiB per TC)
    vmem_cap = _device_vmem_bytes()
    x_blk = tm * H * itemsize
    w_blk = (2 * H * ti + ti * H) * itemsize
    o_blk = tm * H * itemsize
    acc_blk = tm * H * 4
    vmem_est = 2 * (x_blk + w_blk + o_blk) + acc_blk
    vmem_limit = int(min(max(32 * MB, vmem_est * 3 // 2), vmem_cap - 8 * MB))

    kernel = functools.partial(_mlp_kernel, n_j=n_j, ti=ti)

    out2d = pl.pallas_call(
        kernel,
        out_shape=jax.ShapeDtypeStruct((tokens_padded, H), x.dtype),
        grid_spec=pltpu.PrefetchScalarGridSpec(
            num_scalar_prefetch=0,
            grid=grid,
            in_specs=[
                # token tile per i; revisited across j
                pl.BlockSpec((tm, H), lambda i, j: (i, 0)),
                # fused gate/up slab and down slab stream along the I axis
                pl.BlockSpec((H, 2 * ti), lambda i, j: (0, j)),
                pl.BlockSpec((ti, H), lambda i, j: (j, 0)),
            ],
            out_specs=pl.BlockSpec((tm, H), lambda i, j: (i, 0)),
            scratch_shapes=[pltpu.VMEM((tm, H), jnp.float32)],
        ),
        compiler_params=pltpu.CompilerParams(
            dimension_semantics=("parallel", "arbitrary"),
            vmem_limit_bytes=vmem_limit),
        cost_estimate=cost,
    )(x2d, w_gate_up, w_down)

    if tokens_padded != tokens:
        out2d = out2d[:tokens]
    return out2d.reshape(B, S, H)


def mlp(x, w_gate, w_up, w_down):
    """One-shot convenience: plan tiles, pack weights, run the fused kernel.
    (In production, plan/pack once at weight-load time and reuse.)"""
    B, S, H = x.shape
    I = w_gate.shape[1]
    tm, ti, _ = plan_mlp_tiles(B * S, H, I, x.dtype)
    w_gate_up, w_down_p = prepare_mlp_weights(w_gate, w_up, w_down, ti)
    return mlp_forward(x, w_gate_up, w_down_p, tm=tm, ti=ti)


def _reference(x, w_gate, w_up, w_down):
    g = x @ w_gate
    u = x @ w_up
    return (jax.nn.silu(g) * u) @ w_down


if __name__ == "__main__":
    # Small shapes consistent with the module: batch=2, seq=8, hidden=32, intermediate=64
    B, S, H, I = 2, 8, 32, 64
    key = jax.random.PRNGKey(0)
    kx, kg, ku, kd = jax.random.split(key, 4)

    x = jax.random.normal(kx, (B, S, H), dtype=jnp.float32)
    # deterministic synthetic weights (stored [in_dim, out_dim], no bias)
    w_gate = jax.random.normal(kg, (H, I), dtype=jnp.float32) * (1.0 / H ** 0.5)
    w_up = jax.random.normal(ku, (H, I), dtype=jnp.float32) * (1.0 / H ** 0.5)
    w_down = jax.random.normal(kd, (I, H), dtype=jnp.float32) * (1.0 / I ** 0.5)

    # f32 correctness check
    out = mlp(x, w_gate, w_up, w_down)
    out = jax.block_until_ready(out)
    ref = _reference(x, w_gate, w_up, w_down)
    assert out.shape == (B, S, H)
    assert jnp.allclose(out, ref, atol=1e-5, rtol=1e-5), "f32 mismatch vs reference"

    # bf16 path (intended production dtype): loose tolerance smoke check
    out_bf16 = mlp(x.astype(jnp.bfloat16), w_gate.astype(jnp.bfloat16),
                   w_up.astype(jnp.bfloat16), w_down.astype(jnp.bfloat16))
    out_bf16 = jax.block_until_ready(out_bf16)
    assert out_bf16.shape == (B, S, H)
    assert jnp.allclose(out_bf16.astype(jnp.float32), ref, atol=0.15, rtol=0.15), \
        "bf16 mismatch vs reference"

    print("KERNEL_OK")
</pallas_src>

<mosaic_0001>
module attributes {stable_mosaic.version = 11 : i64} {
  func.func @_mlp_kernel(%arg0: i32, %arg1: i32, %arg2: memref<16x32xf32, #tpu.memory_space<vmem>>, %arg3: memref<32x256xf32, #tpu.memory_space<vmem>>, %arg4: memref<128x32xf32, #tpu.memory_space<vmem>>, %arg5: memref<16x32xf32, #tpu.memory_space<vmem>>, %arg6: memref<16x32xf32, #tpu.memory_space<vmem>>) attributes {dimension_semantics = [#tpu.dimension_semantics<parallel>, #tpu.dimension_semantics<arbitrary>], iteration_bounds = array<i64: 1, 1>, scalar_prefetch = 0 : i64, scratch_operands = 1 : i64, tpu.core_type = #tpu.core_type<tc>, window_params = [{transform_indices = @transform_0, window_bounds = array<i64: 16, 32>}, {transform_indices = @transform_1, window_bounds = array<i64: 32, 256>}, {transform_indices = @transform_2, window_bounds = array<i64: 128, 32>}, {transform_indices = @transform_3, window_bounds = array<i64: 16, 32>}]} {
    %c0 = arith.constant 0 : index
    %c0_0 = arith.constant 0 : index
    %0 = vector.load %arg2[%c0, %c0_0] : memref<16x32xf32, #tpu.memory_space<vmem>>, vector<16x32xf32>
    %c0_1 = arith.constant 0 : index
    %c0_2 = arith.constant 0 : index
    %1 = vector.load %arg3[%c0_1, %c0_2] : memref<32x256xf32, #tpu.memory_space<vmem>>, vector<32x256xf32>
    %cst = arith.constant dense<0.000000e+00> : vector<16x256xf32>
    %2 = tpu.matmul %0, %1, %cst {dimension_numbers = #tpu.dot_dimension_numbers<[1], [0], [0], [1], [0, 0, 1, 1], [], []>} : vector<16x32xf32>, vector<32x256xf32>, vector<16x256xf32> -> vector<16x256xf32>
    %3 = vector.extract_strided_slice %2 {offsets = [0, 0], sizes = [16, 128], strides = [1, 1]} : vector<16x256xf32> to vector<16x128xf32>
    %4 = vector.extract_strided_slice %2 {offsets = [0, 128], sizes = [16, 128], strides = [1, 1]} : vector<16x256xf32> to vector<16x128xf32>
    %5 = arith.negf %3 : vector<16x128xf32>
    %6 = math.exp %5 : vector<16x128xf32>
    %cst_3 = arith.constant 1.000000e+00 : f32
    %7 = vector.broadcast %cst_3 : f32 to vector<16x128xf32>
    %8 = arith.addf %7, %6 : vector<16x128xf32>
    %9 = arith.divf %7, %8 : vector<16x128xf32>
    %10 = arith.mulf %3, %9 : vector<16x128xf32>
    %11 = arith.mulf %10, %4 : vector<16x128xf32>
    %c0_4 = arith.constant 0 : index
    %c0_5 = arith.constant 0 : index
    %12 = vector.load %arg4[%c0_4, %c0_5] : memref<128x32xf32, #tpu.memory_space<vmem>>, vector<128x32xf32>
    %cst_6 = arith.constant dense<0.000000e+00> : vector<16x32xf32>
    %13 = tpu.matmul %11, %12, %cst_6 {dimension_numbers = #tpu.dot_dimension_numbers<[1], [0], [0], [1], [0, 0, 1, 1], [], []>} : vector<16x128xf32>, vector<128x32xf32>, vector<16x32xf32> -> vector<16x32xf32>
    %c0_7 = arith.constant 0 : index
    %c0_8 = arith.constant 0 : index
    %14 = vector.load %arg5[%c0_7, %c0_8] : memref<16x32xf32, #tpu.memory_space<vmem>>, vector<16x32xf32>
    tpu.vector_store %arg5[%c0_7, %c0_8], %13 {strides = array<i32>} : memref<16x32xf32, #tpu.memory_space<vmem>>, vector<16x32xf32>,
    return
  }
  func.func @transform_0(%arg0: i32, %arg1: i32) -> (i32, i32) {
    %c0_i32 = arith.constant 0 : i32
    %c0_i32_0 = arith.constant 0 : i32
    return %arg0, %c0_i32 : i32, i32
  }
  func.func @transform_1(%arg0: i32, %arg1: i32) -> (i32, i32) {
    %c0_i32 = arith.constant 0 : i32
    %c0_i32_0 = arith.constant 0 : i32
    return %c0_i32, %arg1 : i32, i32
  }
  func.func @transform_2(%arg0: i32, %arg1: i32) -> (i32, i32) {
    %c0_i32 = arith.constant 0 : i32
    %c0_i32_0 = arith.constant 0 : i32
    return %arg1, %c0_i32 : i32, i32
  }
  func.func @transform_3(%arg0: i32, %arg1: i32) -> (i32, i32) {
    %c0_i32 = arith.constant 0 : i32
    %c0_i32_0 = arith.constant 0 : i32
    return %arg0, %c0_i32 : i32, i32
  }
}

</mosaic_0001>

<llo_original>
// kernel: mlp_forward.1
$region0: #{mlp_forward.1}
  #allocation0 [shape = 'u32[]', space=smem, size = 0x4, offset = 0x4, fixed_abs, tag = 'smem constant byte address 0x4 - core index']
  #allocation1 [shape = 'u32[144,128]{1,0:T(1,128)}', space=vmem, size = 0x12000, scoped, tag = 'internal scratch']
  #allocation2 [shape = 'f32[16,32]{1,0:T(8,128)}', space=vmem, size = 0x2000, scoped, tag = 'scratch operand']
  %s0 = inlined_call_operand.vmem [shape: f32[16,32], index: 0, kind: input, shape index: {}]
  %s1 = inlined_call_operand.vmem [shape: f32[32,256], index: 1, kind: input, shape index: {}]
  %s2 = inlined_call_operand.vmem [shape: f32[128,32], index: 2, kind: input, shape index: {}]
  %s3 = inlined_call_operand.hbm [shape: f32[16,32], index: 3, kind: output, shape index: {}]
  %s4 = sld [smem:[#allocation0]]
  $region22: #{mlp_forward.1} parent=0
    _
  %s6 = ssub.s32 1, %s4
  %s7 = scalar_select 0, %s6, %s4
  $region1: #{mlp_forward.1} parent=0
    #allocation3 [shape = 'u8[8192]{0}', space=vmem, size = 0x2000, scoped, tag = 'output window, operand 0, single buffered']
    #allocation4 [shape = 's32[1]{0}', space=sflag, size = 0x4, scoped, tag = 'scoped memory for mlp_forward.1']
    %8 = vsyncpa [#allocation4], 0
    // Predicated region
    $region2: #{mlp_forward.1} parent=1 // pred_check
      _
    $region3: #{mlp_forward.1} parent=1 // pred_check_branch
      %10 = sbr.rel (0) target = $region5
    $region4: #{mlp_forward.1} parent=1 // pred_region
      _
    $region5: #{mlp_forward.1} parent=1 // pred_fallthru
      _
    // Predicated region
    $region6: #{mlp_forward.1} parent=1 // pred_check
      _
    $region7: #{mlp_forward.1} parent=1 // pred_check_branch
      %12 = sbr.rel (0) target = $region9
    $region8: #{mlp_forward.1} parent=1 // pred_region
      _
    $region9: #{mlp_forward.1} parent=1 // pred_fallthru
      _
    // Predicated region
    $region10: #{mlp_forward.1} parent=1 // pred_check
      _
    $region11: #{mlp_forward.1} parent=1 // pred_check_branch
      %14 = sbr.rel (0) target = $region13
    $region12: #{mlp_forward.1} parent=1 // pred_region
      _
    $region13: #{mlp_forward.1} parent=1 // pred_fallthru
      _
    %v15 = vld [vmem:[%s0] sm:$0xff]
    %v16 = vld [vmem:[%s0 + $0x8] sm:$0xff]
    %v17 = vld [vmem:[%s1] sm:$0xff]
    %v18 = vld [vmem:[%s1 + $0x8] sm:$0xff]
    %v19 = vld [vmem:[%s1 + $0x10] sm:$0xff]
    %v20 = vld [vmem:[%s1 + $0x18] sm:$0xff]
    %v21 = vld [vmem:[%s1 + $0x20] sm:$0xff]
    %v22 = vld [vmem:[%s1 + $0x28] sm:$0xff]
    %v23 = vld [vmem:[%s1 + $0x30] sm:$0xff]
    %v24 = vld [vmem:[%s1 + $0x38] sm:$0xff]
    %vm25 = vcmask 261120
    %v27 = vsel %vm25, %v15, 0
    %v30 = vsel %vm25, %v16, 0
    %32 = vmatprep.subr.mxu0 0.0
    %33 = vmatpush1.msra.mxu0 0.0
    %34 = vmatprep.subr.mxu0 0.0
    %35 = vmatpush1.msra.mxu0 0.0
    %36 = vmatprep.subr.mxu0 0.0
    %37 = vmatpush1.msra.mxu0 0.0
    %38 = vmatprep.subr.mxu0 0.0
    %39 = vmatpush1.msra.mxu0 0.0
    %40 = vmatprep.subr.mxu0 0.0
    %41 = vmatpush1.msra.mxu0 0.0
    %42 = vmatprep.subr.mxu0 0.0
    %43 = vmatpush1.msra.mxu0 0.0
    %44 = vmatprep.subr.mxu0 0.0
    %45 = vmatpush1.msra.mxu0 0.0
    %46 = vmatprep.subr.mxu0 0.0
    %47 = vmatpush1.msra.mxu0 0.0
    %48 = vmatprep.subr.mxu0 0.0
    %49 = vmatpush1.msra.mxu0 0.0
    %50 = vmatprep.subr.mxu0 0.0
    %51 = vmatpush1.msra.mxu0 0.0
    %52 = vmatprep.subr.mxu0 0.0
    %53 = vmatpush1.msra.mxu0 0.0
    %54 = vmatprep.subr.mxu0 0.0
    %55 = vmatpush1.msra.mxu0 0.0
    %56 = vmatprep.subr.mxu0 %v24
    %57 = vmatpush1.msra.mxu0 %v23
    %58 = vmatprep.subr.mxu0 %v22
    %59 = vmatpush1.msra.mxu0 %v21
    %60 = vmatprep.subr.mxu0 %v20
    %61 = vmatpush1.msra.mxu0 %v19
    %62 = vmatprep.subr.mxu0 %v18
    %63 = vmatpush1.msra.mxu0 %v17
    %64 = vmatprep.subr.mxu0 0.0
    %65 = vmatpush2.msra.mxu0 0.0
    %66 = vmatprep.subr.mxu0 0.0
    %67 = vmatpush2.msra.mxu0 0.0
    %68 = vmatprep.subr.mxu0 0.0
    %69 = vmatpush2.msra.mxu0 0.0
    %70 = vmatprep.subr.mxu0 0.0
    %71 = vmatpush2.msra.mxu0 0.0
    %72 = vmatprep.subr.mxu0 0.0
    %73 = vmatpush2.msra.mxu0 0.0
    %74 = vmatprep.subr.mxu0 0.0
    %75 = vmatpush2.msra.mxu0 0.0
    %76 = vmatprep.subr.mxu0 0.0
    %77 = vmatpush2.msra.mxu0 0.0
    %78 = vmatprep.subr.mxu0 0.0
    %79 = vmatpush2.msra.mxu0 0.0
    %80 = vmatprep.subr.mxu0 0.0
    %81 = vmatpush2.msra.mxu0 0.0
    %82 = vmatprep.subr.mxu0 0.0
    %83 = vmatpush2.msra.mxu0 0.0
    %84 = vmatprep.subr.mxu0 0.0
    %85 = vmatpush2.msra.mxu0 0.0
    %86 = vmatprep.subr.mxu0 0.0
    %87 = vmatpush2.msra.mxu0 0.0
    %88 = vmatprep.subr.mxu0 0.0
    %89 = vmatpush2.msra.mxu0 0.0
    %90 = vmatprep.subr.mxu0 0.0
    %91 = vmatpush2.msra.mxu0 0.0
    %92 = vmatprep.subr.mxu0 0.0
    %93 = vmatpush2.msra.mxu0 0.0
    %94 = vmatprep.subr.mxu0 0.0
    %95 = vmatpush2.msra.mxu0 0.0
    %96 = vmatprep.mubr.f32.mxu0 0.0
    %97 = vmatmul.mubr.f32.gmra.mxu0 %v27
    %v98 = vpop.f32.mrf.mxu0
    %v99 = vadd.f32 0.0, %v98
    %v100 = vpop.f32.mrf.mxu0
    %v101 = vadd.f32 0.0, %v100
    %102 = vmatprep.mubr.f32.mxu0 0.0
    %103 = vmatmul.mubr.f32.gmra.mxu0 %v30
    %v104 = vpop.f32.mrf.mxu0
    %v105 = vadd.f32 0.0, %v104
    %v106 = vpop.f32.mrf.mxu0
    %v107 = vadd.f32 0.0, %v106
    %108 = vdwg.mxu0
    %v109 = vxor.u32 %v99, 2147483648
    %v110 = vxor.u32 %v105, 2147483648
    %v111 = vmul.f32 %v109, 1.442695
    %v112 = vpow.pop %v111
    %v113 = vmul.f32 %v110, 1.442695
    %v114 = vpow.pop %v113
    %v115 = vadd.f32 %v112, 1.0
    %v116 = vadd.f32 %v114, 1.0
    %v117 = vrcp.pop %v115
    %v118 = vmul.f32 1.0, %v117
    %v119 = vrcp.pop %v116
    %v120 = vmul.f32 1.0, %v119
    %v121 = vmul.f32 %v99, %v118
    %v122 = vmul.f32 %v105, %v120
    %v123 = vmul.f32 %v121, %v101
    %v124 = vmul.f32 %v122, %v107
    %v125 = vld [vmem:[%s2] sm:$0xff]
    %v126 = vld [vmem:[%s2 + $0x8] sm:$0xff]
    %v127 = vld [vmem:[%s2 + $0x10] sm:$0xff]
    %v128 = vld [vmem:[%s2 + $0x18] sm:$0xff]
    %v129 = vld [vmem:[%s2 + $0x20] sm:$0xff]
    %v130 = vld [vmem:[%s2 + $0x28] sm:$0xff]
    %v131 = vld [vmem:[%s2 + $0x30] sm:$0xff]
    %v132 = vld [vmem:[%s2 + $0x38] sm:$0xff]
    %v133 = vld [vmem:[%s2 + $0x40] sm:$0xff]
    %v134 = vld [vmem:[%s2 + $0x48] sm:$0xff]
    %v135 = vld [vmem:[%s2 + $0x50] sm:$0xff]
    %v136 = vld [vmem:[%s2 + $0x58] sm:$0xff]
    %v137 = vld [vmem:[%s2 + $0x60] sm:$0xff]
    %v138 = vld [vmem:[%s2 + $0x68] sm:$0xff]
    %v139 = vld [vmem:[%s2 + $0x70] sm:$0xff]
    %v140 = vld [vmem:[%s2 + $0x78] sm:$0xff]
    %141 = vmatprep.subr.mxu0 0.0
    %142 = vmatpush1.msra.mxu0 %v140
    %143 = vmatprep.subr.mxu0 0.0
    %144 = vmatpush1.msra.mxu0 %v139
    %145 = vmatprep.subr.mxu0 0.0
    %146 = vmatpush1.msra.mxu0 %v138
    %147 = vmatprep.subr.mxu0 0.0
    %148 = vmatpush1.msra.mxu0 %v137
    %149 = vmatprep.subr.mxu0 0.0
    %150 = vmatpush1.msra.mxu0 %v136
    %151 = vmatprep.subr.mxu0 0.0
    %152 = vmatpush1.msra.mxu0 %v135
    %153 = vmatprep.subr.mxu0 0.0
    %154 = vmatpush1.msra.mxu0 %v134
    %155 = vmatprep.subr.mxu0 0.0
    %156 = vmatpush1.msra.mxu0 %v133
    %157 = vmatprep.subr.mxu0 0.0
    %158 = vmatpush1.msra.mxu0 %v132
    %159 = vmatprep.subr.mxu0 0.0
    %160 = vmatpush1.msra.mxu0 %v131
    %161 = vmatprep.subr.mxu0 0.0
    %162 = vmatpush1.msra.mxu0 %v130
    %163 = vmatprep.subr.mxu0 0.0
    %164 = vmatpush1.msra.mxu0 %v129
    %165 = vmatprep.subr.mxu0 0.0
    %166 = vmatpush1.msra.mxu0 %v128
    %167 = vmatprep.subr.mxu0 0.0
    %168 = vmatpush1.msra.mxu0 %v127
    %169 = vmatprep.subr.mxu0 0.0
    %170 = vmatpush1.msra.mxu0 %v126
    %171 = vmatprep.subr.mxu0 0.0
    %172 = vmatpush1.msra.mxu0 %v125
    %173 = vmatprep.subr.mxu0 0.0
    %174 = vmatpush2.msra.mxu0 0.0
    %175 = vmatprep.subr.mxu0 0.0
    %176 = vmatpush2.msra.mxu0 0.0
    %177 = vmatprep.subr.mxu0 0.0
    %178 = vmatpush2.msra.mxu0 0.0
    %179 = vmatprep.subr.mxu0 0.0
    %180 = vmatpush2.msra.mxu0 0.0
    %181 = vmatprep.subr.mxu0 0.0
    %182 = vmatpush2.msra.mxu0 0.0
    %183 = vmatprep.subr.mxu0 0.0
    %184 = vmatpush2.msra.mxu0 0.0
    %185 = vmatprep.subr.mxu0 0.0
    %186 = vmatpush2.msra.mxu0 0.0
    %187 = vmatprep.subr.mxu0 0.0
    %188 = vmatpush2.msra.mxu0 0.0
    %189 = vmatprep.subr.mxu0 0.0
    %190 = vmatpush2.msra.mxu0 0.0
    %191 = vmatprep.subr.mxu0 0.0
    %192 = vmatpush2.msra.mxu0 0.0
    %193 = vmatprep.subr.mxu0 0.0
    %194 = vmatpush2.msra.mxu0 0.0
    %195 = vmatprep.subr.mxu0 0.0
    %196 = vmatpush2.msra.mxu0 0.0
    %197 = vmatprep.subr.mxu0 0.0
    %198 = vmatpush2.msra.mxu0 0.0
    %199 = vmatprep.subr.mxu0 0.0
    %200 = vmatpush2.msra.mxu0 0.0
    %201 = vmatprep.subr.mxu0 0.0
    %202 = vmatpush2.msra.mxu0 0.0
    %203 = vmatprep.subr.mxu0 0.0
    %204 = vmatpush2.msra.mxu0 0.0
    %205 = vmatprep.mubr.f32.mxu0 0.0
    %206 = vmatmul.mubr.f32.gmra.mxu0 %v123
    %v207 = vpop.f32.mrf.mxu0
    %v208 = vadd.f32 0.0, %v207
    %v209 = vpop.f32.mrf.mxu0
    %210 = vmatprep.mubr.f32.mxu0 0.0
    %211 = vmatmul.mubr.f32.gmra.mxu0 %v124
    %v212 = vpop.f32.mrf.mxu0
    %v213 = vadd.f32 0.0, %v212
    %v214 = vpop.f32.mrf.mxu0
    %215 = vdwg.mxu0
    %216 = vst.msk [vmem:[#allocation3] sm:$0xff] %vm25, %v208
    %217 = vst.msk [vmem:[#allocation3 + $0x8] sm:$0xff] %vm25, %v213
    // Predicated region
    $region14: #{mlp_forward.1} parent=1 // pred_check
      _
    $region15: #{mlp_forward.1} parent=1 // pred_check_branch
      %219 = sbr.rel (0) target = $region17
    $region16: #{mlp_forward.1} parent=1 // pred_region
      %s221 = ssub.s32 256, 256
      %222 = vsyncadd [#allocation4], %s221
      %s223 = sshll.u32 [#allocation3], 4
      %s224 = int_to_ptr.vmem [resolvable:$true] %s223
      %229 = dma.vmem_to_hbm [thread:$0]  %s224, 256, %s3, [#allocation4], 128, 128, 8
    $region17: #{mlp_forward.1} parent=1 // pred_fallthru
      _
    // Predicated region
    $region18: #{mlp_forward.1} parent=1 // pred_check
      _
    $region19: #{mlp_forward.1} parent=1 // pred_check_branch
      %231 = sbr.rel (0) target = $region21
    $region20: #{mlp_forward.1} parent=1 // pred_region
      %232 = dma.done [#allocation4], 256
    $region21: #{mlp_forward.1} parent=1 // pred_fallthru
      _
    %233 = vsyncpa [#allocation4], 1

</llo_original>
